<compile_context>
chip_gen: v5e
topology: v5e:2x2
jax: 0.10.0
libtpu: 0.0.40
codegen_flags: <defaults>
</compile_context>

<pallas_src>
import functools

import jax
import jax.numpy as jnp
from jax.experimental import pallas as pl
from jax.experimental.pallas import tpu as pltpu


# ----------------------------------------------------------------------------
# Gridless path (small / moderate B): whole arrays resident in VMEM, no grid.
# ----------------------------------------------------------------------------
def _pfld_loss_kernel(lm_gt_ref, euler_ref, angle_ref, lm_ref, out_ref, *, inv_b):
    batch = lm_gt_ref.shape[0]

    # weight_angle_b = sum_a (1 - cos(angle - euler_angle_gt))        -> (B, 1)
    diff_ang = angle_ref[...] - euler_ref[...]
    weight_angle = jnp.sum(1.0 - jnp.cos(diff_ang), axis=1, keepdims=True)

    # l2_distant_b = sum_f (landmark_gt - landmarks)**2               -> (B, 1)
    diff_lm = lm_gt_ref[...] - lm_ref[...]
    l2_distant = jnp.sum(diff_lm * diff_lm, axis=1, keepdims=True)

    # Fused batch reduction: lane-pack both per-row losses into (B, 2) and run
    # a single cross-sublane XLU reduce, storing directly to the (1, 2) output.
    lane = jax.lax.broadcasted_iota(jnp.int32, (batch, 2), 1)
    packed = jnp.where(lane == 0, weight_angle * l2_distant, l2_distant)
    out_ref[...] = jnp.sum(packed, axis=0, keepdims=True) * inv_b


# ----------------------------------------------------------------------------
# Batch-tiled path (large B): grid over batch, resident (1, 2) accumulator.
# ----------------------------------------------------------------------------
def _pfld_loss_kernel_tiled(lm_gt_ref, euler_ref, angle_ref, lm_ref, out_ref, *,
                            inv_b, batch):
    i = pl.program_id(0)
    tb = lm_gt_ref.shape[0]

    @pl.when(i == 0)
    def _():
        out_ref[...] = jnp.zeros_like(out_ref)

    diff_ang = angle_ref[...] - euler_ref[...]
    weight_angle = jnp.sum(1.0 - jnp.cos(diff_ang), axis=1, keepdims=True)   # (tb, 1)

    diff_lm = lm_gt_ref[...] - lm_ref[...]
    sq = diff_lm * diff_lm
    # Per-row L2 via ones-vector matmul: at large tiles the XLU carries the
    # batch reduce below, so this rides the otherwise-idle MXU slot.
    ones = jnp.ones((sq.shape[1], 1), sq.dtype)
    l2_distant = jnp.dot(sq, ones, preferred_element_type=jnp.float32)       # (tb, 1)

    lane = jax.lax.broadcasted_iota(jnp.int32, (tb, 2), 1)
    packed = jnp.where(lane == 0, weight_angle * l2_distant, l2_distant)

    # Zero out padded rows of a partial last block (B not a multiple of tb).
    row = i * tb + jax.lax.broadcasted_iota(jnp.int32, (tb, 2), 0)
    packed = jnp.where(row < batch, packed, 0.0)

    out_ref[...] += jnp.sum(packed, axis=0, keepdims=True)

    @pl.when(i == pl.num_programs(0) - 1)
    def _():
        out_ref[...] = out_ref[...] * inv_b


# ----------------------------------------------------------------------------
# Wrapper
# ----------------------------------------------------------------------------
# Gridless while all four padded-f32 inputs fit comfortably under v5e's 16 MiB
# default-scoped VMEM (smallest of v5e/v6e/v7x): ~B * 3 KiB -> threshold 4096.
_GRIDLESS_MAX_ROWS = 4096


def _cost_estimate(batch, lm_dim, ang_dim):
    # sub + mul + add per landmark element; sub/rsub/add per angle element.
    return pl.CostEstimate(
        flops=int(batch * (3 * lm_dim + 4 * ang_dim + 4)),
        transcendentals=int(batch * ang_dim),                  # cos on (B, A)
        bytes_accessed=int(4 * (2 * batch * lm_dim + 2 * batch * ang_dim) + 8),
    )


def pfld_loss(landmark_gt, euler_angle_gt, angle, landmarks,
              train_batchsize=None, *, block_b=None):
    """Pallas implementation of PFLDLoss.forward.

    `train_batchsize` is accepted for API parity but (as in the PyTorch module)
    is unused: the mean already normalizes by the batch size.  `block_b`
    forces the batch-tiled accumulator path with that tile size.
    """
    del train_batchsize
    batch, lm_dim = landmark_gt.shape
    ang_dim = angle.shape[1]
    inv_b = 1.0 / batch
    cost = _cost_estimate(batch, lm_dim, ang_dim)
    vmem = pltpu.MemorySpace.VMEM

    if block_b is None and batch <= _GRIDLESS_MAX_ROWS:
        out = pl.pallas_call(
            functools.partial(_pfld_loss_kernel, inv_b=inv_b),
            out_shape=jax.ShapeDtypeStruct((1, 2), jnp.float32),
            in_specs=[
                pl.BlockSpec(memory_space=vmem),  # landmark_gt     (B, L)
                pl.BlockSpec(memory_space=vmem),  # euler_angle_gt  (B, A)
                pl.BlockSpec(memory_space=vmem),  # angle           (B, A)
                pl.BlockSpec(memory_space=vmem),  # landmarks       (B, L)
            ],
            out_specs=pl.BlockSpec(memory_space=vmem),
            cost_estimate=cost,
        )(landmark_gt, euler_angle_gt, angle, landmarks)
        return out[0, 0], out[0, 1]

    # Batch-tiled path.  tb=512 stays far under every generation's scoped VMEM
    # limit even with BlockSpec double-buffering (2 landmark inputs x 2 buffers
    # x tb*256*4 B ~= 1 MiB), so no vmem_limit_bytes override is needed.
    tb = 512 if block_b is None else int(block_b)
    tb = min(tb, batch)
    if tb != batch and tb % 8 != 0:
        tb = max(8, (tb // 8) * 8)
    grid = (pl.cdiv(batch, tb),)

    out = pl.pallas_call(
        functools.partial(_pfld_loss_kernel_tiled, inv_b=inv_b, batch=batch),
        out_shape=jax.ShapeDtypeStruct((1, 2), jnp.float32),
        grid=grid,
        in_specs=[
            pl.BlockSpec((tb, lm_dim), lambda i: (i, 0)),   # landmark_gt
            pl.BlockSpec((tb, ang_dim), lambda i: (i, 0)),  # euler_angle_gt
            pl.BlockSpec((tb, ang_dim), lambda i: (i, 0)),  # angle
            pl.BlockSpec((tb, lm_dim), lambda i: (i, 0)),   # landmarks
        ],
        out_specs=pl.BlockSpec((1, 2), lambda i: (0, 0)),
        compiler_params=pltpu.CompilerParams(
            dimension_semantics=("arbitrary",)),            # reduction axis
        cost_estimate=cost,
    )(landmark_gt, euler_angle_gt, angle, landmarks)
    # TODO(synk): on v7x, emit per-TensorCore partial (2, 2) sums over a leading
    # "parallel" axis and add them in the wrapper to use both cores at large B.
    return out[0, 0], out[0, 1]


def _reference(landmark_gt, euler_angle_gt, angle, landmarks):
    weight_angle = jnp.sum(1.0 - jnp.cos(angle - euler_angle_gt), axis=1)
    l2_distant = jnp.sum((landmark_gt - landmarks) ** 2, axis=1)
    return jnp.mean(weight_angle * l2_distant), jnp.mean(l2_distant)


if __name__ == "__main__":
    key = jax.random.PRNGKey(0)

    # --- Small PFLD-shaped case (gridless path): B=8, 98 landmarks * 2, 3 angles.
    B, L, A = 8, 196, 3
    k1, k2, k3, k4, k5 = jax.random.split(key, 5)
    landmark_gt = jax.random.normal(k1, (B, L), dtype=jnp.float32)
    landmarks = jax.random.normal(k2, (B, L), dtype=jnp.float32)
    euler_angle_gt = jax.random.normal(k3, (B, A), dtype=jnp.float32)
    angle = jax.random.normal(k4, (B, A), dtype=jnp.float32)

    w_loss, l2_loss = jax.jit(pfld_loss)(
        landmark_gt, euler_angle_gt, angle, landmarks, B)
    jax.block_until_ready((w_loss, l2_loss))
    ref_w, ref_l2 = _reference(landmark_gt, euler_angle_gt, angle, landmarks)
    assert jnp.allclose(w_loss, ref_w, rtol=1e-5, atol=1e-5), (w_loss, ref_w)
    assert jnp.allclose(l2_loss, ref_l2, rtol=1e-5, atol=1e-5), (l2_loss, ref_l2)

    # --- Larger case exercising the batch-tiled accumulator path (and the
    #     partial-last-block masking: 1000 is not a multiple of 256).
    B2 = 1000
    g1, g2, g3, g4 = jax.random.split(k5, 4)
    lm_gt2 = jax.random.normal(g1, (B2, L), dtype=jnp.float32)
    lm2 = jax.random.normal(g2, (B2, L), dtype=jnp.float32)
    eu2 = jax.random.normal(g3, (B2, A), dtype=jnp.float32)
    an2 = jax.random.normal(g4, (B2, A), dtype=jnp.float32)

    tiled_fn = jax.jit(functools.partial(pfld_loss, block_b=256))
    w2, l22 = tiled_fn(lm_gt2, eu2, an2, lm2, B2)
    jax.block_until_ready((w2, l22))
    rw2, rl22 = _reference(lm_gt2, eu2, an2, lm2)
    assert jnp.allclose(w2, rw2, rtol=1e-4, atol=1e-4), (w2, rw2)
    assert jnp.allclose(l22, rl22, rtol=1e-4, atol=1e-4), (l22, rl22)

    print("KERNEL_OK")
</pallas_src>

<mosaic_0001>
module attributes {stable_mosaic.version = 11 : i64} {
  func.func @_pfld_loss_kernel(%arg0: memref<8x196xf32, #tpu.memory_space<vmem>>, %arg1: memref<8x3xf32, #tpu.memory_space<vmem>>, %arg2: memref<8x3xf32, #tpu.memory_space<vmem>>, %arg3: memref<8x196xf32, #tpu.memory_space<vmem>>, %arg4: memref<1x2xf32, #tpu.memory_space<vmem>>) attributes {dimension_semantics = [], scalar_prefetch = 0 : i64, scratch_operands = 0 : i64, tpu.core_type = #tpu.core_type<tc>} {
    %c0 = arith.constant 0 : index
    %c0_0 = arith.constant 0 : index
    %0 = vector.load %arg2[%c0, %c0_0] : memref<8x3xf32, #tpu.memory_space<vmem>>, vector<8x3xf32>
    %c0_1 = arith.constant 0 : index
    %c0_2 = arith.constant 0 : index
    %1 = vector.load %arg1[%c0_1, %c0_2] : memref<8x3xf32, #tpu.memory_space<vmem>>, vector<8x3xf32>
    %2 = arith.subf %0, %1 : vector<8x3xf32>
    %3 = math.cos %2 : vector<8x3xf32>
    %cst = arith.constant 1.000000e+00 : f32
    %4 = vector.broadcast %cst : f32 to vector<8x3xf32>
    %5 = arith.subf %4, %3 : vector<8x3xf32>
    %cst_3 = arith.constant dense<0.000000e+00> : vector<8xf32>
    %6 = vector.multi_reduction <add>, %5, %cst_3 [1] : vector<8x3xf32> to vector<8xf32>
    %7 = vector.shape_cast %6 : vector<8xf32> to vector<8x1xf32>
    %c0_4 = arith.constant 0 : index
    %c0_5 = arith.constant 0 : index
    %8 = vector.load %arg0[%c0_4, %c0_5] : memref<8x196xf32, #tpu.memory_space<vmem>>, vector<8x196xf32>
    %c0_6 = arith.constant 0 : index
    %c0_7 = arith.constant 0 : index
    %9 = vector.load %arg3[%c0_6, %c0_7] : memref<8x196xf32, #tpu.memory_space<vmem>>, vector<8x196xf32>
    %10 = arith.subf %8, %9 : vector<8x196xf32>
    %11 = arith.mulf %10, %10 : vector<8x196xf32>
    %cst_8 = arith.constant dense<0.000000e+00> : vector<8xf32>
    %12 = vector.multi_reduction <add>, %11, %cst_8 [1] : vector<8x196xf32> to vector<8xf32>
    %13 = vector.shape_cast %12 : vector<8xf32> to vector<8x1xf32>
    %14 = tpu.iota {dimensions = array<i32: 1>} : vector<8x2xi32>
    %c0_i32 = arith.constant 0 : i32
    %15 = vector.broadcast %c0_i32 : i32 to vector<8x2xi32>
    %16 = arith.cmpi eq, %14, %15 : vector<8x2xi32>
    %17 = arith.mulf %7, %13 : vector<8x1xf32>
    %18 = vector.shape_cast %17 : vector<8x1xf32> to vector<8x1xf32>
    %19 = vector.broadcast %18 : vector<8x1xf32> to vector<8x2xf32>
    %20 = vector.shape_cast %13 : vector<8x1xf32> to vector<8x1xf32>
    %21 = vector.broadcast %20 : vector<8x1xf32> to vector<8x2xf32>
    %22 = arith.select %16, %19, %21 : vector<8x2xi1>, vector<8x2xf32>
    %cst_9 = arith.constant dense<0.000000e+00> : vector<2xf32>
    %23 = vector.multi_reduction <add>, %22, %cst_9 [0] : vector<8x2xf32> to vector<2xf32>
    %24 = vector.shape_cast %23 : vector<2xf32> to vector<1x2xf32>
    %cst_10 = arith.constant 1.250000e-01 : f32
    %25 = vector.broadcast %cst_10 : f32 to vector<1x2xf32>
    %26 = arith.mulf %24, %25 : vector<1x2xf32>
    %c0_11 = arith.constant 0 : index
    %c0_12 = arith.constant 0 : index
    %27 = vector.load %arg4[%c0_11, %c0_12] : memref<1x2xf32, #tpu.memory_space<vmem>>, vector<1x2xf32>
    tpu.vector_store %arg4[%c0_11, %c0_12], %26 {strides = array<i32>} : memref<1x2xf32, #tpu.memory_space<vmem>>, vector<1x2xf32>,
    return
  }
}

</mosaic_0001>

<llo_original>
// kernel: pfld_loss.1
$region0: #{pfld_loss.1}
  #allocation0 [shape = 'u32[]', space=smem, size = 0x4, offset = 0x4, fixed_abs, tag = 'smem constant byte address 0x4 - core index']
  #allocation1 [shape = 'u32[72,128]{1,0:T(1,128)}', space=vmem, size = 0x9000, scoped, tag = 'internal scratch']
  %s0 = inlined_call_operand.vmem [shape: f32[8,196], index: 0, kind: input, shape index: {}]
  %s1 = inlined_call_operand.vmem [shape: f32[8,3], index: 1, kind: input, shape index: {}]
  %s2 = inlined_call_operand.vmem [shape: f32[8,3], index: 2, kind: input, shape index: {}]
  %s3 = inlined_call_operand.hbm [shape: f32[8,196], index: 3, kind: input, shape index: {}]
  %s4 = inlined_call_operand.vmem [shape: f32[1,2], index: 4, kind: output, shape index: {}]
  %s5 = sld [smem:[#allocation0]]
  $region30: #{pfld_loss.1} parent=0
    _
  %s7 = ssub.s32 1, %s5
  %s8 = scalar_select 0, %s7, %s5
  $region1: #{pfld_loss.1} parent=0
    #allocation2 [shape = 'u8[8192]{0}', space=vmem, size = 0x2000, scoped, tag = 'input window, operand 3, single buffered']
    #allocation3 [shape = 's32[1]{0}', space=sflag, size = 0x4, scoped, tag = 'scoped memory for pfld_loss.1']
    %9 = vsyncpa [#allocation3], 0
    // Predicated region
    $region2: #{pfld_loss.1} parent=1 // pred_check
      _
    $region3: #{pfld_loss.1} parent=1 // pred_check_branch
      %11 = sbr.rel (0) target = $region5
    $region4: #{pfld_loss.1} parent=1 // pred_region
      _
    $region5: #{pfld_loss.1} parent=1 // pred_fallthru
      _
    // Predicated region
    $region6: #{pfld_loss.1} parent=1 // pred_check
      _
    $region7: #{pfld_loss.1} parent=1 // pred_check_branch
      %13 = sbr.rel (0) target = $region9
    $region8: #{pfld_loss.1} parent=1 // pred_region
      _
    $region9: #{pfld_loss.1} parent=1 // pred_fallthru
      _
    // Predicated region
    $region10: #{pfld_loss.1} parent=1 // pred_check
      _
    $region11: #{pfld_loss.1} parent=1 // pred_check_branch
      %15 = sbr.rel (0) target = $region13
    $region12: #{pfld_loss.1} parent=1 // pred_region
      _
    $region13: #{pfld_loss.1} parent=1 // pred_fallthru
      _
    // Predicated region
    $region14: #{pfld_loss.1} parent=1 // pred_check
      _
    $region15: #{pfld_loss.1} parent=1 // pred_check_branch
      %17 = sbr.rel (0) target = $region17
    $region16: #{pfld_loss.1} parent=1 // pred_region
      %19 = vsyncadd [#allocation3], 0
      %s21 = sshll.u32 %s3, 4
      %s22 = int_to_ptr.hbm [resolvable:$true] %s21
      %s23 = sshll.u32 [#allocation2], 4
      %s24 = int_to_ptr.vmem [resolvable:$true] %s23
      %26 = dma.hbm_to_vmem [thread:$0]  %s22, 256, %s24, [#allocation3]
    $region17: #{pfld_loss.1} parent=1 // pred_fallthru
      _
    // Predicated region
    $region18: #{pfld_loss.1} parent=1 // pred_check
      _
    $region19: #{pfld_loss.1} parent=1 // pred_check_branch
      %28 = sbr.rel (0) target = $region21
    $region20: #{pfld_loss.1} parent=1 // pred_region
      %30 = dma.done [#allocation3], 256
    $region21: #{pfld_loss.1} parent=1 // pred_fallthru
      _
    %v31 = vld [vmem:[%s2] sm:$0xff]
    %v32 = vld [vmem:[%s1] sm:$0xff]
    %v33 = vsub.f32 %v31, %v32
    %v34 = vand.u32 2147483647, %v33
    %vm35 = vcmp.le.f32.partialorder %v34, 0.7853982
    %vm36 = vcmp.lt.s32.totalorder %v33, 0
    %v37 = vand.u32 %v33, 2139095040
    %v38 = vshrl.u32 %v37, 23
    %v39 = vsub.s32 %v38, 127
    %v40 = vand.u32 2147483647, %v33
    %v41 = vand.u32 %v40, 8388607
    %v42 = vor.u32 %v41, 8388608
    %v43 = vsub.s32 0, %v42
    %v44 = vadd.s32 %v39, 1
    %vm45 = vcmp.gt.s32.totalorder %v44, 0
    %v46 = vsel %vm45, %v44, 0
    %v47 = vshrl.u32 %v46, 5
    %v48 = vand.u32 %v46, 31
    %v49 = vsub.s32 32, %v48
    %v50 = vshrl.u32 683565275, %v49
    %v51 = vshll.u32 683565275, %v48
    %v52 = vshrl.u32 2475754826, %v49
    %v53 = vor.u32 %v51, %v52
    %v54 = vshll.u32 2475754826, %v48
    %v55 = vshrl.u32 2131351028, %v49
    %v56 = vor.u32 %v54, %v55
    %v57 = vshll.u32 2131351028, %v48
    %v58 = vshrl.u32 2102212464, %v49
    %v59 = vor.u32 %v57, %v58
    %v60 = vshll.u32 2102212464, %v48
    %v61 = vshrl.u32 920167782, %v49
    %v62 = vor.u32 %v60, %v61
    %v63 = vshll.u32 920167782, %v48
    %v64 = vshrl.u32 1326507024, %v49
    %v65 = vor.u32 %v63, %v64
    %vm66 = vcmp.lt.s32.totalorder %v47, 1
    %vm67 = vcmp.lt.s32.totalorder %v47, 2
    %vm68 = vcmp.lt.s32.totalorder %v47, 3
    %vm69 = vcmp.lt.s32.totalorder %v47, 4
    %v70 = vsel %vm66, %v50, %v53
    %v71 = vsel %vm69, %v59, 2102212464
    %v72 = vsel %vm68, %v56, %v71
    %v73 = vsel %vm67, %v70, %v72
    %v74 = vsel %vm66, %v53, %v56
    %v75 = vsel %vm69, %v62, 920167782
    %v76 = vsel %vm68, %v59, %v75
    %v77 = vsel %vm67, %v74, %v76
    %v78 = vsel %vm66, %v56, %v59
    %v79 = vsel %vm69, %v65, 1326507024
    %v80 = vsel %vm68, %v62, %v79
    %v81 = vsel %vm67, %v78, %v80
    %v82 = vshll.u32 %v42, 8
    %v83 = vand.u32 %v82, 65535
    %v84 = vshrl.u32 %v82, 16
    %v85 = vand.u32 %v81, 65535
    %v86 = vshrl.u32 %v81, 16
    %v87 = vmul.u32 %v83, %v85
    %v88 = vmul.u32 %v83, %v86
    %v89 = vmul.u32 %v84, %v85
    %v90 = vmul.u32 %v84, %v86
    %v91 = vshll.u32 %v88, 16
    %v92 = vshrl.u32 %v88, 16
    %v93 = vshll.u32 %v89, 16
    %v94 = vshrl.u32 %v89, 16
    %vm95 = vc.u32 %v87, %v91
    %v96 = vsel %vm95, 1, 0
    %v97 = vadd.s32 %v87, %v91
    %v98 = vadd.s32 %v90, %v96
    %vm99 = vc.u32 %v97, %v93
    %v100 = vsel %vm99, 1, 0
    %v101 = vadd.s32 %v97, %v93
    %v102 = vadd.s32 %v98, %v100
    %v103 = vadd.s32 %v102, %v92
    %v104 = vadd.s32 %v103, %v94
    %v105 = vand.u32 %v82, 65535
    %v106 = vshrl.u32 %v82, 16
    %v107 = vand.u32 %v77, 65535
    %v108 = vshrl.u32 %v77, 16
    %v109 = vmul.u32 %v105, %v107
    %v110 = vmul.u32 %v105, %v108
    %v111 = vmul.u32 %v106, %v107
    %v112 = vmul.u32 %v106, %v108
    %v113 = vshll.u32 %v110, 16
    %v114 = vshrl.u32 %v110, 16
    %v115 = vshll.u32 %v111, 16
    %v116 = vshrl.u32 %v111, 16
    %vm117 = vc.u32 %v109, %v113
    %v118 = vsel %vm117, 1, 0
    %v119 = vadd.s32 %v109, %v113
    %v120 = vadd.s32 %v112, %v118
    %vm121 = vc.u32 %v119, %v115
    %v122 = vsel %vm121, 1, 0
    %v123 = vadd.s32 %v119, %v115
    %v124 = vadd.s32 %v120, %v122
    %v125 = vadd.s32 %v124, %v114
    %v126 = vadd.s32 %v125, %v116
    %v127 = vmul.u32 %v82, %v73
    %v128 = vadd.s32 %v104, %v123
    %vm129 = vc.u32 %v104, %v123
    %v130 = vadd.s32 %v126, 1
    %v131 = vsel %vm129, %v130, %v126
    %v132 = vadd.s32 %v127, %v131
    %v133 = vadd.s32 %v132, 536870912
    %v134 = vshrl.u32 %v133, 30
    %v135 = vshll.u32 %v134, 30
    %v136 = vsub.s32 %v132, %v135
    %vm137 = vcmp.lt.s32.totalorder %v136, 0
    %v138 = vsub.s32 0, %v136
    %v139 = vsel %vm137, %v138, %v136
    %v140 = vclz %v139
    %v141 = vsub.s32 %v140, 2
    %vm142 = vcmp.gt.s32.totalorder 0, %v141
    %v143 = vsel %vm142, 0, %v141
    %v144 = vsub.s32 32, %v143
    %v145 = vshll.u32 %v136, %v143
    %v146 = vshrl.u32 %v128, %v144
    %v147 = vor.u32 %v145, %v146
    %v148 = vsub.s32 4294967266, %v143
    %v149 = vadd.s32 %v148, 127
    %v150 = vshll.u32 %v149, 23
    %v151 = vor.u32 4788187, %v150
    %v152 = vand.u32 2147483647, %v151
    %v154 = vcvt.s32.f32 %v147
    %v155 = vmul.f32 %v154, %v152
    %v156 = vxor.u32 %v155, 2147483648
    %v157 = vsel %vm36, %v156, %v155
    %v158 = vsub.s32 4, %v134
    %v159 = vsel %vm36, %v158, %v134
    %v160 = vsel %vm35, %v33, %v157
    %v161 = vsel %vm35, 0, %v159
    %v162 = vmul.f32 %v160, %v160
    %v163 = vmul.f32 %v162, -0.001358992
    %v164 = vadd.f32 %v163, 0.041655596
    %v165 = vmul.f32 %v162, %v164
    %v166 = vadd.f32 %v165, -0.4999988
    %v167 = vmul.f32 %v162, %v166
    %v168 = vadd.f32 1.0, %v167
    %v169 = vmul.f32 %v160, %v160
    %v170 = vmul.f32 %v169, -0.00019511016
    %v171 = vadd.f32 %v170, 0.008332121
    %v172 = vmul.f32 %v169, %v171
    %v173 = vadd.f32 %v172, -0.16666654
    %v174 = vmul.f32 %v169, %v173
    %v175 = vadd.f32 %v174, 1.0
    %v176 = vmul.f32 %v175, %v160
    %vm177 = vweird.f32 %v33
    %v178 = vand.u32 %v161, 3
    %vm179 = vcmp.lt.s32.totalorder %v178, 2
    %vm180 = vcmp.eq.s32.totalorder %v178, 0
    %v181 = vxor.u32 %v176, 2147483648
    %v182 = vsel %vm180, %v168, %v181
    %vm183 = vcmp.eq.s32.totalorder %v178, 2
    %v184 = vxor.u32 %v168, 2147483648
    %v185 = vsel %vm183, %v184, %v176
    %v186 = vsel %vm179, %v182, %v185
    %v187 = vsel %vm177, nan, %v186
    %v188 = vsub.f32 1.0, %v187
    %vm189 = vcmask 23552
    %v190 = vsel %vm189, %v188, 0.0
    %191 = vadd.xlane.f32.xlu0 %v190
    %v192 = vpop.xlane.xlu0 %191
    %v193 = vld [vmem:[%s0] sm:$0xff]
    %v194 = vld [vmem:[%s0 + $0x8] sm:$0xff]
    %v195 = vld [vmem:[#allocation2] sm:$0xff]
    %v196 = vld [vmem:[#allocation2 + $0x8] sm:$0xff]
    %v197 = vsub.f32 %v193, %v195
    %v198 = vsub.f32 %v194, %v196
    %v199 = vmul.f32 %v197, %v197
    %v200 = vmul.f32 %v198, %v198
    %vm201 = vcmask 556032
    %v202 = vsel %vm201, %v200, 0.0
    %v203 = vadd.f32 %v199, %v202
    %204 = vadd.xlane.f32.xlu0 %v203
    %v205 = vpop.xlane.xlu0 %204
    %v206 = vlaneseq
    %v207 = vand.u32 %v206, 127
    %vm208 = vcmp.eq.s32.totalorder %v207, 0
    %v209 = vmul.f32 %v192, %v205
    %v210 = vsel %vm208, %v209, %v205
    %vm211 = vcmask 15360
    %v212 = vsel %vm211, %v210, 0.0
    %v213 = vrot.slane %v212, 4
    %v214 = vadd.f32 %v212, %v213
    %v215 = vrot.slane %v214, 2
    %v216 = vadd.f32 %v214, %v215
    %v217 = vrot.slane %v216, 1
    %v218 = vadd.f32 %v216, %v217
    %v219 = vmul.f32 %v218, 0.125
    %vm220 = vcmask 8192
    %221 = vst.msk [vmem:[%s4] sm:$0x1] %vm220, %v219
    // Predicated region
    $region22: #{pfld_loss.1} parent=1 // pred_check
      _
    $region23: #{pfld_loss.1} parent=1 // pred_check_branch
      %223 = sbr.rel (0) target = $region25
    $region24: #{pfld_loss.1} parent=1 // pred_region
      _
    $region25: #{pfld_loss.1} parent=1 // pred_fallthru
      _
    // Predicated region
    $region26: #{pfld_loss.1} parent=1 // pred_check
      _
    $region27: #{pfld_loss.1} parent=1 // pred_check_branch
      %225 = sbr.rel (0) target = $region29
    $region28: #{pfld_loss.1} parent=1 // pred_region
      _
    $region29: #{pfld_loss.1} parent=1 // pred_fallthru
      _
    %226 = vsyncpa [#allocation3], 1

</llo_original>
